<compile_context>
chip_gen: v5e
topology: v5e:2x2
jax: 0.10.0
libtpu: 0.0.40
codegen_flags: <defaults>
</compile_context>

<pallas_src>
import functools

import jax
import jax.numpy as jnp
from jax import lax
from jax.experimental import pallas as pl
from jax.experimental.pallas import tpu as pltpu

EPS = 1e-5


def basic_block_kernel(x_ref, w1_ref, g1_ref, b1_ref, w2_ref, g2_ref, b2_ref,
                       s_ref, o_ref, kcat_ref, *, n, h):
    # x_ref / o_ref: (N*H, W*C) lane-dense activation slabs.
    nh, wc = x_ref.shape

    # (NH, 1) h-index column (row = n*H + h); masks broadcast across the 128
    # lanes inside jnp.where, so only one narrow vreg of mask pressure.
    h_idx = lax.broadcasted_iota(jnp.int32, (n, h, 1), 1).reshape(nh, 1)
    up_ok = h_idx > 0          # x[h-1] exists
    dn_ok = h_idx < h - 1      # x[h+1] exists

    def conv3x3(v, w_ref):
        # kh taps via XLU sublane rolls (+ boundary masks); kw taps and the W
        # zero padding are folded into the banded weights.  The three taps are
        # packed as bf16 into one (NH, 3*WC) scratch slab so the whole conv is
        # a single K=3*WC bf16 MXU matmul with f32 accumulation.
        xm1 = jnp.where(up_ok, pltpu.roll(v, shift=1, axis=0), 0.0)       # x[h-1]
        xp1 = jnp.where(dn_ok, pltpu.roll(v, shift=nh - 1, axis=0), 0.0)  # x[h+1]
        kcat_ref[:, 0:wc] = xm1.astype(jnp.bfloat16)
        kcat_ref[:, wc:2 * wc] = v.astype(jnp.bfloat16)
        kcat_ref[:, 2 * wc:3 * wc] = xp1.astype(jnp.bfloat16)
        return jnp.dot(kcat_ref[...], w_ref[...],
                       preferred_element_type=jnp.float32)

    def bn_train(a, g_ref, b_ref):
        # Two-pass batch norm in f32 (avoids E[x^2]-E[x]^2 cancellation).
        # s_ref is a (W*C, W*C) block matrix of I_C / (N*H*W): one tiny
        # vector-matrix product both sums each channel over the W positions
        # fused into the lane axis and broadcasts the per-channel result back
        # in the (w, c) lane pattern.
        mean = jnp.dot(jnp.sum(a, axis=0, keepdims=True), s_ref[...],
                       preferred_element_type=jnp.float32)
        cent = a - mean
        var = jnp.dot(jnp.sum(cent * cent, axis=0, keepdims=True), s_ref[...],
                      preferred_element_type=jnp.float32)
        return cent * lax.rsqrt(var + EPS) * g_ref[...] + b_ref[...]

    out1 = jnp.maximum(bn_train(conv3x3(x_ref[...], w1_ref), g1_ref, b1_ref), 0.0)
    out2 = bn_train(conv3x3(out1, w2_ref), g2_ref, b2_ref)

    # Identity shortcut (stride == 1, in_planes == planes) + final relu.
    # x is re-read from VMEM here (cheap vld) instead of being kept live.
    o_ref[...] = jnp.maximum(out2 + x_ref[...], 0.0)


def _banded_conv_weights(w_hwio, w_dim):
    """(3, 3, Cin, Cout) -> (3*W*Cin, W*Cout) stacked banded block matrices.

    For a fixed kh, block B[kh] maps an input row laid out as (w', ci) on the
    lane axis to an output row laid out as (w, co):
        B[kh, w'*Cin + ci, w*Cout + co] = w[kh, w' - w + 1, ci, co]  if |w'-w| <= 1
    and 0 otherwise; the missing off-band entries implement the W zero padding.
    The three kh blocks are stacked along K to match the in-kernel K-concat
    order [x[h-1], x[h], x[h+1]].
    """
    _, kws, c_in, c_out = w_hwio.shape
    bw = jnp.zeros((3, w_dim * c_in, w_dim * c_out), w_hwio.dtype)
    for k in range(kws):
        d = k - 1                              # input column offset: w' = w + d
        for w in range(w_dim):
            wp = w + d
            if 0 <= wp < w_dim:
                bw = bw.at[:, wp * c_in:(wp + 1) * c_in,
                           w * c_out:(w + 1) * c_out].set(w_hwio[:, k])
    return bw.reshape(3 * w_dim * c_in, w_dim * c_out)


def basic_block(x_nchw, w1, g1, b1, w2, g2, b2):
    """x_nchw: (N, C, H, W) float32. Returns (N, C, H, W) float32."""
    N, C, H, W = x_nchw.shape
    Cout = w1.shape[-1]
    assert Cout == C, "identity shortcut requires in_planes == planes (stride 1)"
    NH, WC = N * H, W * Cout

    # Lane-dense layout: rows = (n, h), lanes = (w, c);  W*C = 128 here.
    x2d = jnp.transpose(x_nchw, (0, 2, 3, 1)).reshape(NH, W * C)
    # Banded conv weights stored bf16 (MXU-native on v5e/v6e/v7x, halves DMA).
    w1b = _banded_conv_weights(w1, W).astype(jnp.bfloat16)   # (3*W*C, W*C)
    w2b = _banded_conv_weights(w2, W).astype(jnp.bfloat16)
    g1l, b1l = jnp.tile(g1, W).reshape(1, WC), jnp.tile(b1, W).reshape(1, WC)
    g2l, b2l = jnp.tile(g2, W).reshape(1, WC), jnp.tile(b2, W).reshape(1, WC)
    s_mat = jnp.tile(jnp.eye(Cout, dtype=jnp.float32), (W, W)) / float(N * H * W)

    kernel = functools.partial(basic_block_kernel, n=N, h=H)
    out2d = pl.pallas_call(
        kernel,
        out_shape=jax.ShapeDtypeStruct((NH, WC), jnp.float32),
        grid_spec=pltpu.PrefetchScalarGridSpec(
            num_scalar_prefetch=0,
            grid=(1,),  # BN needs full-batch statistics; everything fits VMEM
            in_specs=[
                pl.BlockSpec((NH, W * C), lambda i: (0, 0)),        # x slab
                pl.BlockSpec((3 * W * C, WC), lambda i: (0, 0)),    # conv1 banded (bf16)
                pl.BlockSpec((1, WC), lambda i: (0, 0)),            # gamma1 (lane)
                pl.BlockSpec((1, WC), lambda i: (0, 0)),            # beta1  (lane)
                pl.BlockSpec((3 * W * C, WC), lambda i: (0, 0)),    # conv2 banded (bf16)
                pl.BlockSpec((1, WC), lambda i: (0, 0)),            # gamma2 (lane)
                pl.BlockSpec((1, WC), lambda i: (0, 0)),            # beta2  (lane)
                pl.BlockSpec((WC, WC), lambda i: (0, 0)),           # channel-sum matrix
            ],
            out_specs=pl.BlockSpec((NH, WC), lambda i: (0, 0)),
            scratch_shapes=[pltpu.VMEM((NH, 3 * WC), jnp.bfloat16)],  # K-concat slab
        ),
        compiler_params=pltpu.CompilerParams(
            dimension_semantics=("arbitrary",)),
    )(x2d, w1b, g1l, b1l, w2b, g2l, b2l, s_mat)

    return jnp.transpose(out2d.reshape(N, H, W, Cout), (0, 3, 1, 2))


# ---------------- pure-JAX reference for verification ----------------
def _conv3x3_ref(x_nhwc, w_hwio):
    return lax.conv_general_dilated(
        x_nhwc, w_hwio, window_strides=(1, 1), padding="SAME",
        dimension_numbers=("NHWC", "HWIO", "NHWC"))


def _bn_train_ref(x, g, b):
    mean = jnp.mean(x, axis=(0, 1, 2))
    var = jnp.var(x, axis=(0, 1, 2))   # biased (ddof=0), matches PyTorch norm
    return (x - mean) * lax.rsqrt(var + EPS) * g + b


def basic_block_ref(x_nchw, w1, g1, b1, w2, g2, b2):
    x = jnp.transpose(x_nchw, (0, 2, 3, 1))
    out = jnp.maximum(_bn_train_ref(_conv3x3_ref(x, w1), g1, b1), 0.0)
    out = _bn_train_ref(_conv3x3_ref(out, w2), g2, b2)
    out = jnp.maximum(out + x, 0.0)
    return jnp.transpose(out, (0, 3, 1, 2))


if __name__ == "__main__":
    # Small shapes: batch=2, in_planes=planes=8, spatial 16x16  (W*C = 128 lanes).
    N, C, H, W = 2, 8, 16, 16

    key = jax.random.PRNGKey(0)
    kx, kw1, kw2, kg1, kb1, kg2, kb2 = jax.random.split(key, 7)

    x = jax.random.normal(kx, (N, C, H, W), jnp.float32)
    fan_in = 3 * 3 * C
    w1 = jax.random.normal(kw1, (3, 3, C, C), jnp.float32) * (2.0 / fan_in) ** 0.5
    w2 = jax.random.normal(kw2, (3, 3, C, C), jnp.float32) * (2.0 / fan_in) ** 0.5
    g1 = 1.0 + 0.1 * jax.random.normal(kg1, (C,), jnp.float32)
    b1 = 0.1 * jax.random.normal(kb1, (C,), jnp.float32)
    g2 = 1.0 + 0.1 * jax.random.normal(kg2, (C,), jnp.float32)
    b2 = 0.1 * jax.random.normal(kb2, (C,), jnp.float32)

    out = jax.block_until_ready(basic_block(x, w1, g1, b1, w2, g2, b2))
    ref = jax.block_until_ready(basic_block_ref(x, w1, g1, b1, w2, g2, b2))

    assert out.shape == (N, C, H, W), out.shape
    # Tolerance deliberately loosened vs the f32 reference: conv matmul operands
    # are bf16 (f32 accumulation, f32 BN), giving ~1% end-to-end deviation.
    assert jnp.allclose(out, ref, atol=5e-2, rtol=5e-2), \
        float(jnp.max(jnp.abs(out - ref)))
    print("KERNEL_OK")
</pallas_src>

<mosaic_0001>
module attributes {stable_mosaic.version = 11 : i64} {
  func.func @basic_block_kernel(%arg0: i32, %arg1: memref<32x128xf32, #tpu.memory_space<vmem>>, %arg2: memref<384x128xbf16, #tpu.memory_space<vmem>>, %arg3: memref<1x128xf32, #tpu.memory_space<vmem>>, %arg4: memref<1x128xf32, #tpu.memory_space<vmem>>, %arg5: memref<384x128xbf16, #tpu.memory_space<vmem>>, %arg6: memref<1x128xf32, #tpu.memory_space<vmem>>, %arg7: memref<1x128xf32, #tpu.memory_space<vmem>>, %arg8: memref<128x128xf32, #tpu.memory_space<vmem>>, %arg9: memref<32x128xf32, #tpu.memory_space<vmem>>, %arg10: memref<32x384xbf16, #tpu.memory_space<vmem>>) attributes {dimension_semantics = [#tpu.dimension_semantics<arbitrary>], iteration_bounds = array<i64: 1>, scalar_prefetch = 0 : i64, scratch_operands = 1 : i64, tpu.core_type = #tpu.core_type<tc>, window_params = [{pipeline_mode = #tpu.pipeline_mode<synchronous>, transform_indices = @transform_0, window_bounds = array<i64: 32, 128>}, {pipeline_mode = #tpu.pipeline_mode<synchronous>, transform_indices = @transform_1, window_bounds = array<i64: 384, 128>}, {pipeline_mode = #tpu.pipeline_mode<synchronous>, transform_indices = @transform_2, window_bounds = array<i64: 1, 128>}, {pipeline_mode = #tpu.pipeline_mode<synchronous>, transform_indices = @transform_3, window_bounds = array<i64: 1, 128>}, {pipeline_mode = #tpu.pipeline_mode<synchronous>, transform_indices = @transform_4, window_bounds = array<i64: 384, 128>}, {pipeline_mode = #tpu.pipeline_mode<synchronous>, transform_indices = @transform_5, window_bounds = array<i64: 1, 128>}, {pipeline_mode = #tpu.pipeline_mode<synchronous>, transform_indices = @transform_6, window_bounds = array<i64: 1, 128>}, {pipeline_mode = #tpu.pipeline_mode<synchronous>, transform_indices = @transform_7, window_bounds = array<i64: 128, 128>}, {pipeline_mode = #tpu.pipeline_mode<synchronous>, transform_indices = @transform_8, window_bounds = array<i64: 32, 128>}]} {
    %0 = tpu.iota {dimensions = array<i32: 1>} : vector<2x16x1xi32>
    %1 = vector.shape_cast %0 : vector<2x16x1xi32> to vector<32x1xi32>
    %c0_i32 = arith.constant 0 : i32
    %2 = vector.broadcast %c0_i32 : i32 to vector<32x1xi32>
    %3 = arith.cmpi sgt, %1, %2 : vector<32x1xi32>
    %c15_i32 = arith.constant 15 : i32
    %4 = vector.broadcast %c15_i32 : i32 to vector<32x1xi32>
    %5 = arith.cmpi slt, %1, %4 : vector<32x1xi32>
    %c0 = arith.constant 0 : index
    %c0_0 = arith.constant 0 : index
    %6 = vector.load %arg1[%c0, %c0_0] : memref<32x128xf32, #tpu.memory_space<vmem>>, vector<32x128xf32>
    %c1_i32 = arith.constant 1 : i32
    %7 = tpu.dynamic_rotate %6 by %c1_i32 dim 0 : vector<32x128xf32>, i32 -> vector<32x128xf32>
    %cst = arith.constant 0.000000e+00 : f32
    %8 = vector.shape_cast %3 : vector<32x1xi1> to vector<32x1xi1>
    %9 = vector.broadcast %8 : vector<32x1xi1> to vector<32x128xi1>
    %10 = vector.broadcast %cst : f32 to vector<32x128xf32>
    %11 = arith.select %9, %7, %10 : vector<32x128xi1>, vector<32x128xf32>
    %c31_i32 = arith.constant 31 : i32
    %12 = tpu.dynamic_rotate %6 by %c31_i32 dim 0 : vector<32x128xf32>, i32 -> vector<32x128xf32>
    %cst_1 = arith.constant 0.000000e+00 : f32
    %13 = vector.shape_cast %5 : vector<32x1xi1> to vector<32x1xi1>
    %14 = vector.broadcast %13 : vector<32x1xi1> to vector<32x128xi1>
    %15 = vector.broadcast %cst_1 : f32 to vector<32x128xf32>
    %16 = arith.select %14, %12, %15 : vector<32x128xi1>, vector<32x128xf32>
    %17 = arith.truncf %11 : vector<32x128xf32> to vector<32x128xbf16>
    %c0_2 = arith.constant 0 : index
    %c0_3 = arith.constant 0 : index
    %18 = vector.load %arg10[%c0_2, %c0_3] : memref<32x384xbf16, #tpu.memory_space<vmem>>, vector<32x128xbf16>
    tpu.vector_store %arg10[%c0_2, %c0_3], %17 {strides = array<i32>} : memref<32x384xbf16, #tpu.memory_space<vmem>>, vector<32x128xbf16>,
    %19 = arith.truncf %6 : vector<32x128xf32> to vector<32x128xbf16>
    %c0_4 = arith.constant 0 : index
    %c128 = arith.constant 128 : index
    %20 = vector.load %arg10[%c0_4, %c128] : memref<32x384xbf16, #tpu.memory_space<vmem>>, vector<32x128xbf16>
    tpu.vector_store %arg10[%c0_4, %c128], %19 {strides = array<i32>} : memref<32x384xbf16, #tpu.memory_space<vmem>>, vector<32x128xbf16>,
    %21 = arith.truncf %16 : vector<32x128xf32> to vector<32x128xbf16>
    %c0_5 = arith.constant 0 : index
    %c256 = arith.constant 256 : index
    %22 = vector.load %arg10[%c0_5, %c256] : memref<32x384xbf16, #tpu.memory_space<vmem>>, vector<32x128xbf16>
    tpu.vector_store %arg10[%c0_5, %c256], %21 {strides = array<i32>} : memref<32x384xbf16, #tpu.memory_space<vmem>>, vector<32x128xbf16>,
    %c0_6 = arith.constant 0 : index
    %c0_7 = arith.constant 0 : index
    %23 = vector.load %arg10[%c0_6, %c0_7] : memref<32x384xbf16, #tpu.memory_space<vmem>>, vector<32x384xbf16>
    %c0_8 = arith.constant 0 : index
    %c0_9 = arith.constant 0 : index
    %24 = vector.load %arg2[%c0_8, %c0_9] : memref<384x128xbf16, #tpu.memory_space<vmem>>, vector<384x128xbf16>
    %cst_10 = arith.constant dense<0.000000e+00> : vector<32x128xf32>
    %25 = tpu.matmul %23, %24, %cst_10 {dimension_numbers = #tpu.dot_dimension_numbers<[1], [0], [0], [1], [0, 0, 1, 1], [], []>} : vector<32x384xbf16>, vector<384x128xbf16>, vector<32x128xf32> -> vector<32x128xf32>
    %cst_11 = arith.constant dense<0.000000e+00> : vector<128xf32>
    %26 = vector.multi_reduction <add>, %25, %cst_11 [0] : vector<32x128xf32> to vector<128xf32>
    %27 = vector.shape_cast %26 : vector<128xf32> to vector<1x128xf32>
    %c0_12 = arith.constant 0 : index
    %c0_13 = arith.constant 0 : index
    %28 = vector.load %arg8[%c0_12, %c0_13] : memref<128x128xf32, #tpu.memory_space<vmem>>, vector<128x128xf32>
    %cst_14 = arith.constant dense<0.000000e+00> : vector<1x128xf32>
    %29 = tpu.matmul %27, %28, %cst_14 {dimension_numbers = #tpu.dot_dimension_numbers<[1], [0], [0], [1], [0, 0, 1, 1], [], []>} : vector<1x128xf32>, vector<128x128xf32>, vector<1x128xf32> -> vector<1x128xf32>
    %30 = vector.broadcast %29 : vector<1x128xf32> to vector<32x128xf32>
    %31 = arith.subf %25, %30 : vector<32x128xf32>
    %32 = arith.mulf %31, %31 : vector<32x128xf32>
    %cst_15 = arith.constant dense<0.000000e+00> : vector<128xf32>
    %33 = vector.multi_reduction <add>, %32, %cst_15 [0] : vector<32x128xf32> to vector<128xf32>
    %34 = vector.shape_cast %33 : vector<128xf32> to vector<1x128xf32>
    %c0_16 = arith.constant 0 : index
    %c0_17 = arith.constant 0 : index
    %35 = vector.load %arg8[%c0_16, %c0_17] : memref<128x128xf32, #tpu.memory_space<vmem>>, vector<128x128xf32>
    %cst_18 = arith.constant dense<0.000000e+00> : vector<1x128xf32>
    %36 = tpu.matmul %34, %35, %cst_18 {dimension_numbers = #tpu.dot_dimension_numbers<[1], [0], [0], [1], [0, 0, 1, 1], [], []>} : vector<1x128xf32>, vector<128x128xf32>, vector<1x128xf32> -> vector<1x128xf32>
    %cst_19 = arith.constant 9.99999974E-6 : f32
    %37 = vector.broadcast %cst_19 : f32 to vector<1x128xf32>
    %38 = arith.addf %36, %37 : vector<1x128xf32>
    %39 = math.rsqrt %38 : vector<1x128xf32>
    %40 = vector.broadcast %39 : vector<1x128xf32> to vector<32x128xf32>
    %41 = arith.mulf %31, %40 : vector<32x128xf32>
    %c0_20 = arith.constant 0 : index
    %c0_21 = arith.constant 0 : index
    %42 = vector.load %arg3[%c0_20, %c0_21] : memref<1x128xf32, #tpu.memory_space<vmem>>, vector<1x128xf32>
    %43 = vector.broadcast %42 : vector<1x128xf32> to vector<32x128xf32>
    %44 = arith.mulf %41, %43 : vector<32x128xf32>
    %c0_22 = arith.constant 0 : index
    %c0_23 = arith.constant 0 : index
    %45 = vector.load %arg4[%c0_22, %c0_23] : memref<1x128xf32, #tpu.memory_space<vmem>>, vector<1x128xf32>
    %46 = vector.broadcast %45 : vector<1x128xf32> to vector<32x128xf32>
    %47 = arith.addf %44, %46 : vector<32x128xf32>
    %cst_24 = arith.constant 0.000000e+00 : f32
    %48 = vector.broadcast %cst_24 : f32 to vector<32x128xf32>
    %49 = arith.maximumf %47, %48 : vector<32x128xf32>
    %c1_i32_25 = arith.constant 1 : i32
    %50 = tpu.dynamic_rotate %49 by %c1_i32_25 dim 0 : vector<32x128xf32>, i32 -> vector<32x128xf32>
    %cst_26 = arith.constant 0.000000e+00 : f32
    %51 = vector.shape_cast %3 : vector<32x1xi1> to vector<32x1xi1>
    %52 = vector.broadcast %51 : vector<32x1xi1> to vector<32x128xi1>
    %53 = vector.broadcast %cst_26 : f32 to vector<32x128xf32>
    %54 = arith.select %52, %50, %53 : vector<32x128xi1>, vector<32x128xf32>
    %c31_i32_27 = arith.constant 31 : i32
    %55 = tpu.dynamic_rotate %49 by %c31_i32_27 dim 0 : vector<32x128xf32>, i32 -> vector<32x128xf32>
    %cst_28 = arith.constant 0.000000e+00 : f32
    %56 = vector.shape_cast %5 : vector<32x1xi1> to vector<32x1xi1>
    %57 = vector.broadcast %56 : vector<32x1xi1> to vector<32x128xi1>
    %58 = vector.broadcast %cst_28 : f32 to vector<32x128xf32>
    %59 = arith.select %57, %55, %58 : vector<32x128xi1>, vector<32x128xf32>
    %60 = arith.truncf %54 : vector<32x128xf32> to vector<32x128xbf16>
    %c0_29 = arith.constant 0 : index
    %c0_30 = arith.constant 0 : index
    %61 = vector.load %arg10[%c0_29, %c0_30] : memref<32x384xbf16, #tpu.memory_space<vmem>>, vector<32x128xbf16>
    tpu.vector_store %arg10[%c0_29, %c0_30], %60 {strides = array<i32>} : memref<32x384xbf16, #tpu.memory_space<vmem>>, vector<32x128xbf16>,
    %62 = arith.truncf %49 : vector<32x128xf32> to vector<32x128xbf16>
    %c0_31 = arith.constant 0 : index
    %c128_32 = arith.constant 128 : index
    %63 = vector.load %arg10[%c0_31, %c128_32] : memref<32x384xbf16, #tpu.memory_space<vmem>>, vector<32x128xbf16>
    tpu.vector_store %arg10[%c0_31, %c128_32], %62 {strides = array<i32>} : memref<32x384xbf16, #tpu.memory_space<vmem>>, vector<32x128xbf16>,
    %64 = arith.truncf %59 : vector<32x128xf32> to vector<32x128xbf16>
    %c0_33 = arith.constant 0 : index
    %c256_34 = arith.constant 256 : index
    %65 = vector.load %arg10[%c0_33, %c256_34] : memref<32x384xbf16, #tpu.memory_space<vmem>>, vector<32x128xbf16>
    tpu.vector_store %arg10[%c0_33, %c256_34], %64 {strides = array<i32>} : memref<32x384xbf16, #tpu.memory_space<vmem>>, vector<32x128xbf16>,
    %c0_35 = arith.constant 0 : index
    %c0_36 = arith.constant 0 : index
    %66 = vector.load %arg10[%c0_35, %c0_36] : memref<32x384xbf16, #tpu.memory_space<vmem>>, vector<32x384xbf16>
    %c0_37 = arith.constant 0 : index
    %c0_38 = arith.constant 0 : index
    %67 = vector.load %arg5[%c0_37, %c0_38] : memref<384x128xbf16, #tpu.memory_space<vmem>>, vector<384x128xbf16>
    %cst_39 = arith.constant dense<0.000000e+00> : vector<32x128xf32>
    %68 = tpu.matmul %66, %67, %cst_39 {dimension_numbers = #tpu.dot_dimension_numbers<[1], [0], [0], [1], [0, 0, 1, 1], [], []>} : vector<32x384xbf16>, vector<384x128xbf16>, vector<32x128xf32> -> vector<32x128xf32>
    %cst_40 = arith.constant dense<0.000000e+00> : vector<128xf32>
    %69 = vector.multi_reduction <add>, %68, %cst_40 [0] : vector<32x128xf32> to vector<128xf32>
    %70 = vector.shape_cast %69 : vector<128xf32> to vector<1x128xf32>
    %c0_41 = arith.constant 0 : index
    %c0_42 = arith.constant 0 : index
    %71 = vector.load %arg8[%c0_41, %c0_42] : memref<128x128xf32, #tpu.memory_space<vmem>>, vector<128x128xf32>
    %cst_43 = arith.constant dense<0.000000e+00> : vector<1x128xf32>
    %72 = tpu.matmul %70, %71, %cst_43 {dimension_numbers = #tpu.dot_dimension_numbers<[1], [0], [0], [1], [0, 0, 1, 1], [], []>} : vector<1x128xf32>, vector<128x128xf32>, vector<1x128xf32> -> vector<1x128xf32>
    %73 = vector.broadcast %72 : vector<1x128xf32> to vector<32x128xf32>
    %74 = arith.subf %68, %73 : vector<32x128xf32>
    %75 = arith.mulf %74, %74 : vector<32x128xf32>
    %cst_44 = arith.constant dense<0.000000e+00> : vector<128xf32>
    %76 = vector.multi_reduction <add>, %75, %cst_44 [0] : vector<32x128xf32> to vector<128xf32>
    %77 = vector.shape_cast %76 : vector<128xf32> to vector<1x128xf32>
    %c0_45 = arith.constant 0 : index
    %c0_46 = arith.constant 0 : index
    %78 = vector.load %arg8[%c0_45, %c0_46] : memref<128x128xf32, #tpu.memory_space<vmem>>, vector<128x128xf32>
    %cst_47 = arith.constant dense<0.000000e+00> : vector<1x128xf32>
    %79 = tpu.matmul %77, %78, %cst_47 {dimension_numbers = #tpu.dot_dimension_numbers<[1], [0], [0], [1], [0, 0, 1, 1], [], []>} : vector<1x128xf32>, vector<128x128xf32>, vector<1x128xf32> -> vector<1x128xf32>
    %cst_48 = arith.constant 9.99999974E-6 : f32
    %80 = vector.broadcast %cst_48 : f32 to vector<1x128xf32>
    %81 = arith.addf %79, %80 : vector<1x128xf32>
    %82 = math.rsqrt %81 : vector<1x128xf32>
    %83 = vector.broadcast %82 : vector<1x128xf32> to vector<32x128xf32>
    %84 = arith.mulf %74, %83 : vector<32x128xf32>
    %c0_49 = arith.constant 0 : index
    %c0_50 = arith.constant 0 : index
    %85 = vector.load %arg6[%c0_49, %c0_50] : memref<1x128xf32, #tpu.memory_space<vmem>>, vector<1x128xf32>
    %86 = vector.broadcast %85 : vector<1x128xf32> to vector<32x128xf32>
    %87 = arith.mulf %84, %86 : vector<32x128xf32>
    %c0_51 = arith.constant 0 : index
    %c0_52 = arith.constant 0 : index
    %88 = vector.load %arg7[%c0_51, %c0_52] : memref<1x128xf32, #tpu.memory_space<vmem>>, vector<1x128xf32>
    %89 = vector.broadcast %88 : vector<1x128xf32> to vector<32x128xf32>
    %90 = arith.addf %87, %89 : vector<32x128xf32>
    %c0_53 = arith.constant 0 : index
    %c0_54 = arith.constant 0 : index
    %91 = vector.load %arg1[%c0_53, %c0_54] : memref<32x128xf32, #tpu.memory_space<vmem>>, vector<32x128xf32>
    %92 = arith.addf %90, %91 : vector<32x128xf32>
    %cst_55 = arith.constant 0.000000e+00 : f32
    %93 = vector.broadcast %cst_55 : f32 to vector<32x128xf32>
    %94 = arith.maximumf %92, %93 : vector<32x128xf32>
    %c0_56 = arith.constant 0 : index
    %c0_57 = arith.constant 0 : index
    %95 = vector.load %arg9[%c0_56, %c0_57] : memref<32x128xf32, #tpu.memory_space<vmem>>, vector<32x128xf32>
    tpu.vector_store %arg9[%c0_56, %c0_57], %94 {strides = array<i32>} : memref<32x128xf32, #tpu.memory_space<vmem>>, vector<32x128xf32>,
    return
  }
  func.func @transform_0(%arg0: i32) -> (i32, i32) {
    %c0_i32 = arith.constant 0 : i32
    %c0_i32_0 = arith.constant 0 : i32
    %c0_i32_1 = arith.constant 0 : i32
    return %c0_i32, %c0_i32_0 : i32, i32
  }
  func.func @transform_1(%arg0: i32) -> (i32, i32) {
    %c0_i32 = arith.constant 0 : i32
    %c0_i32_0 = arith.constant 0 : i32
    %c0_i32_1 = arith.constant 0 : i32
    return %c0_i32, %c0_i32_0 : i32, i32
  }
  func.func @transform_2(%arg0: i32) -> (i32, i32) {
    %c0_i32 = arith.constant 0 : i32
    %c0_i32_0 = arith.constant 0 : i32
    %c0_i32_1 = arith.constant 0 : i32
    return %c0_i32, %c0_i32_0 : i32, i32
  }
  func.func @transform_3(%arg0: i32) -> (i32, i32) {
    %c0_i32 = arith.constant 0 : i32
    %c0_i32_0 = arith.constant 0 : i32
    %c0_i32_1 = arith.constant 0 : i32
    return %c0_i32, %c0_i32_0 : i32, i32
  }
  func.func @transform_4(%arg0: i32) -> (i32, i32) {
    %c0_i32 = arith.constant 0 : i32
    %c0_i32_0 = arith.constant 0 : i32
    %c0_i32_1 = arith.constant 0 : i32
    return %c0_i32, %c0_i32_0 : i32, i32
  }
  func.func @transform_5(%arg0: i32) -> (i32, i32) {
    %c0_i32 = arith.constant 0 : i32
    %c0_i32_0 = arith.constant 0 : i32
    %c0_i32_1 = arith.constant 0 : i32
    return %c0_i32, %c0_i32_0 : i32, i32
  }
  func.func @transform_6(%arg0: i32) -> (i32, i32) {
    %c0_i32 = arith.constant 0 : i32
    %c0_i32_0 = arith.constant 0 : i32
    %c0_i32_1 = arith.constant 0 : i32
    return %c0_i32, %c0_i32_0 : i32, i32
  }
  func.func @transform_7(%arg0: i32) -> (i32, i32) {
    %c0_i32 = arith.constant 0 : i32
    %c0_i32_0 = arith.constant 0 : i32
    %c0_i32_1 = arith.constant 0 : i32
    return %c0_i32, %c0_i32_0 : i32, i32
  }
  func.func @transform_8(%arg0: i32) -> (i32, i32) {
    %c0_i32 = arith.constant 0 : i32
    %c0_i32_0 = arith.constant 0 : i32
    %c0_i32_1 = arith.constant 0 : i32
    return %c0_i32, %c0_i32_0 : i32, i32
  }
}

</mosaic_0001>

<llo_original>
// kernel: tpu_custom_call.1
$region0: #{tpu_custom_call.1}
  #allocation0 [shape = 'u32[]', space=smem, size = 0x4, offset = 0x4, fixed_abs, tag = 'smem constant byte address 0x4 - core index']
  #allocation1 [shape = 'u32[72,128]{1,0:T(1,128)}', space=vmem, size = 0x9000, scoped, tag = 'internal scratch']
  #allocation2 [shape = 'bf16[32,384]{1,0:T(8,128)(2,1)}', space=vmem, size = 0x6000, scoped, tag = 'scratch operand']
  %s0 = inlined_call_operand.hbm [shape: f32[32,128], index: 0, kind: input, shape index: {}]
  %s1 = inlined_call_operand.hbm [shape: bf16[384,128], index: 1, kind: input, shape index: {}]
  %s2 = inlined_call_operand.vmem [shape: f32[1,128], index: 2, kind: input, shape index: {}]
  %s3 = inlined_call_operand.vmem [shape: f32[1,128], index: 3, kind: input, shape index: {}]
  %s4 = inlined_call_operand.hbm [shape: bf16[384,128], index: 4, kind: input, shape index: {}]
  %s5 = inlined_call_operand.vmem [shape: f32[1,128], index: 5, kind: input, shape index: {}]
  %s6 = inlined_call_operand.vmem [shape: f32[1,128], index: 6, kind: input, shape index: {}]
  %s7 = inlined_call_operand.hbm [shape: f32[128,128], index: 7, kind: input, shape index: {}]
  %s8 = inlined_call_operand.hbm [shape: f32[32,128], index: 8, kind: output, shape index: {}]
  %s9 = sld [smem:[#allocation0]]
  $region58: #{tpu_custom_call.1} parent=0
    _
  %s11 = ssub.s32 1, %s9
  %s12 = scalar_select 0, %s11, %s9
  $region1: #{tpu_custom_call.1} parent=0
    #allocation3 [shape = 'u8[16384]{0}', space=vmem, size = 0x4000, scoped, tag = 'input window, operand 0, single buffered']
    #allocation4 [shape = 's32[1]{0}', space=sflag, size = 0x4, scoped, tag = 'scoped memory for tpu_custom_call.1']
    #allocation5 [shape = 's32[1]{0}', space=sflag, size = 0x4, scoped, tag = 'scoped memory for tpu_custom_call.1']
    #allocation6 [shape = 'u8[98304]{0}', space=vmem, size = 0x18000, scoped, tag = 'input window, operand 1, single buffered']
    #allocation7 [shape = 's32[1]{0}', space=sflag, size = 0x4, scoped, tag = 'scoped memory for tpu_custom_call.1']
    #allocation8 [shape = 'u8[98304]{0}', space=vmem, size = 0x18000, scoped, tag = 'input window, operand 4, single buffered']
    #allocation9 [shape = 'u8[65536]{0}', space=vmem, size = 0x10000, scoped, tag = 'input window, operand 7, single buffered']
    #allocation10 [shape = 's32[1]{0}', space=sflag, size = 0x4, scoped, tag = 'scoped memory for tpu_custom_call.1']
    #allocation11 [shape = 'u8[16384]{0}', space=vmem, size = 0x4000, scoped, tag = 'output window, operand 0, single buffered']
    %13 = vsyncpa [#allocation4], 0
    %14 = vsyncpa [#allocation7], 0
    %15 = vsyncpa [#allocation10], 0
    %16 = vsyncpa [#allocation5], 0
    // Predicated region
    $region2: #{tpu_custom_call.1} parent=1 // pred_check
      _
    $region3: #{tpu_custom_call.1} parent=1 // pred_check_branch
      %18 = sbr.rel (0) target = $region5
    $region4: #{tpu_custom_call.1} parent=1 // pred_region
      %20 = vsyncadd [#allocation4], 0
      %s21 = sshll.u32 %s0, 4
      %s22 = int_to_ptr.hbm [resolvable:$true] %s21
      %s23 = sshll.u32 [#allocation3], 4
      %s24 = int_to_ptr.vmem [resolvable:$true] %s23
      %29 = dma.hbm_to_vmem [thread:$0]  %s22, 512, %s24, [#allocation4], 128, 128, 8
    $region5: #{tpu_custom_call.1} parent=1 // pred_fallthru
      _
    // Predicated region
    $region6: #{tpu_custom_call.1} parent=1 // pred_check
      _
    $region7: #{tpu_custom_call.1} parent=1 // pred_check_branch
      %31 = sbr.rel (0) target = $region9
    $region8: #{tpu_custom_call.1} parent=1 // pred_region
      %33 = vsyncadd [#allocation7], 0
      %s34 = sshll.u32 %s1, 4
      %s35 = int_to_ptr.hbm [resolvable:$true] %s34
      %s36 = sshll.u32 [#allocation6], 4
      %s37 = int_to_ptr.vmem [resolvable:$true] %s36
      %42 = dma.hbm_to_vmem [thread:$0]  %s35, 3072, %s37, [#allocation7], 64, 64, 4
    $region9: #{tpu_custom_call.1} parent=1 // pred_fallthru
      _
    // Predicated region
    $region10: #{tpu_custom_call.1} parent=1 // pred_check
      _
    $region11: #{tpu_custom_call.1} parent=1 // pred_check_branch
      %44 = sbr.rel (0) target = $region13
    $region12: #{tpu_custom_call.1} parent=1 // pred_region
      _
    $region13: #{tpu_custom_call.1} parent=1 // pred_fallthru
      _
    // Predicated region
    $region14: #{tpu_custom_call.1} parent=1 // pred_check
      _
    $region15: #{tpu_custom_call.1} parent=1 // pred_check_branch
      %46 = sbr.rel (0) target = $region17
    $region16: #{tpu_custom_call.1} parent=1 // pred_region
      _
    $region17: #{tpu_custom_call.1} parent=1 // pred_fallthru
      _
    // Predicated region
    $region18: #{tpu_custom_call.1} parent=1 // pred_check
      _
    $region19: #{tpu_custom_call.1} parent=1 // pred_check_branch
      %48 = sbr.rel (0) target = $region21
    $region20: #{tpu_custom_call.1} parent=1 // pred_region
      %50 = vsyncadd [#allocation7], 0
      %s51 = sshll.u32 %s4, 4
      %s52 = int_to_ptr.hbm [resolvable:$true] %s51
      %s53 = sshll.u32 [#allocation8], 4
      %s54 = int_to_ptr.vmem [resolvable:$true] %s53
      %59 = dma.hbm_to_vmem [thread:$0]  %s52, 3072, %s54, [#allocation7], 64, 64, 4
    $region21: #{tpu_custom_call.1} parent=1 // pred_fallthru
      _
    // Predicated region
    $region22: #{tpu_custom_call.1} parent=1 // pred_check
      _
    $region23: #{tpu_custom_call.1} parent=1 // pred_check_branch
      %61 = sbr.rel (0) target = $region25
    $region24: #{tpu_custom_call.1} parent=1 // pred_region
      _
    $region25: #{tpu_custom_call.1} parent=1 // pred_fallthru
      _
    // Predicated region
    $region26: #{tpu_custom_call.1} parent=1 // pred_check
      _
    $region27: #{tpu_custom_call.1} parent=1 // pred_check_branch
      %63 = sbr.rel (0) target = $region29
    $region28: #{tpu_custom_call.1} parent=1 // pred_region
      _
    $region29: #{tpu_custom_call.1} parent=1 // pred_fallthru
      _
    // Predicated region
    $region30: #{tpu_custom_call.1} parent=1 // pred_check
      _
    $region31: #{tpu_custom_call.1} parent=1 // pred_check_branch
      %65 = sbr.rel (0) target = $region33
    $region32: #{tpu_custom_call.1} parent=1 // pred_region
      %67 = vsyncadd [#allocation10], 0
      %s68 = sshll.u32 %s7, 4
      %s69 = int_to_ptr.hbm [resolvable:$true] %s68
      %s70 = sshll.u32 [#allocation9], 4
      %s71 = int_to_ptr.vmem [resolvable:$true] %s70
      %76 = dma.hbm_to_vmem [thread:$0]  %s69, 2048, %s71, [#allocation10], 128, 128, 8
    $region33: #{tpu_custom_call.1} parent=1 // pred_fallthru
      _
    // Predicated region
    $region34: #{tpu_custom_call.1} parent=1 // pred_check
      _
    $region35: #{tpu_custom_call.1} parent=1 // pred_check_branch
      %78 = sbr.rel (0) target = $region37
    $region36: #{tpu_custom_call.1} parent=1 // pred_region
      %80 = dma.done [#allocation4], 512
    $region37: #{tpu_custom_call.1} parent=1 // pred_fallthru
      _
    // Predicated region
    $region38: #{tpu_custom_call.1} parent=1 // pred_check
      _
    $region39: #{tpu_custom_call.1} parent=1 // pred_check_branch
      %82 = sbr.rel (0) target = $region41
    $region40: #{tpu_custom_call.1} parent=1 // pred_region
      %84 = dma.done [#allocation7], 3072
    $region41: #{tpu_custom_call.1} parent=1 // pred_fallthru
      _
    // Predicated region
    $region42: #{tpu_custom_call.1} parent=1 // pred_check
      _
    $region43: #{tpu_custom_call.1} parent=1 // pred_check_branch
      %86 = sbr.rel (0) target = $region45
    $region44: #{tpu_custom_call.1} parent=1 // pred_region
      %88 = dma.done [#allocation7], 3072
    $region45: #{tpu_custom_call.1} parent=1 // pred_fallthru
      _
    // Predicated region
    $region46: #{tpu_custom_call.1} parent=1 // pred_check
      _
    $region47: #{tpu_custom_call.1} parent=1 // pred_check_branch
      %90 = sbr.rel (0) target = $region49
    $region48: #{tpu_custom_call.1} parent=1 // pred_region
      %92 = dma.done [#allocation10], 2048
    $region49: #{tpu_custom_call.1} parent=1 // pred_fallthru
      _
    %v93 = vlaneseq
    %v94 = vshrl.u32 %v93, 7
    %v95 = vadd.s32 %v94, 8
    %vm96 = vcmp.gt.s32.totalorder %v94, 0
    %vm97 = vcmp.gt.s32.totalorder %v95, 0
    %vm98 = vcmp.lt.s32.totalorder %v94, 15
    %vm99 = vcmp.lt.s32.totalorder %v95, 15
    %v100 = vld [vmem:[#allocation3] sm:$0xff]
    %v101 = vld [vmem:[#allocation3 + $0x8] sm:$0xff]
    %v102 = vld [vmem:[#allocation3 + $0x10] sm:$0xff]
    %v103 = vld [vmem:[#allocation3 + $0x18] sm:$0xff]
    %v104 = vrot.slane %v100, 7
    %v105 = vrot.slane %v101, 7
    %v106 = vrot.slane %v102, 7
    %v107 = vrot.slane %v103, 7
    %vm108 = vcmp.lt.s32.totalorder %v94, 1
    %v109 = vsel %vm108, %v106, %v107
    %v110 = vsel %vm108, %v105, %v106
    %v111 = vsel %vm108, %v104, %v105
    %v112 = vsel %vm108, %v107, %v104
    %v113 = vsel %vm96, 1, 0
    %v114 = vsel %vm97, 1, 0
    %vm115 = vcmp.eq.s32.totalorder %v113, 1
    %vm116 = vcmp.eq.s32.totalorder %v114, 1
    %v117 = vsel %vm115, %v112, 0.0
    %v118 = vsel %vm116, %v111, 0.0
    %v119 = vsel %vm115, %v110, 0.0
    %v120 = vsel %vm116, %v109, 0.0
    %v121 = vrot.slane %v100, 1
    %v122 = vrot.slane %v101, 1
    %v123 = vrot.slane %v102, 1
    %v124 = vrot.slane %v103, 1
    %vm125 = vcmp.lt.s32.totalorder %v94, 7
    %v126 = vsel %vm125, %v123, %v124
    %v127 = vsel %vm125, %v122, %v123
    %v128 = vsel %vm125, %v121, %v122
    %v129 = vsel %vm125, %v124, %v121
    %v130 = vsel %vm98, 1, 0
    %v131 = vsel %vm99, 1, 0
    %vm132 = vcmp.eq.s32.totalorder %v130, 1
    %vm133 = vcmp.eq.s32.totalorder %v131, 1
    %v134 = vsel %vm132, %v128, 0.0
    %v135 = vsel %vm133, %v127, 0.0
    %v136 = vsel %vm132, %v126, 0.0
    %v137 = vsel %vm133, %v129, 0.0
    %v138 = vpack.c.bf16 %v117, %v117
    %v139 = vpack.c.bf16 %v118, %v118
    %v140 = vpack.c.bf16 %v119, %v119
    %v141 = vpack.c.bf16 %v120, %v120
    %142 = vst [vmem:[#allocation2] sm:$0xf] %v138
    %143 = vst [vmem:[#allocation2 + $0xc] sm:$0xf] %v139
    %144 = vst [vmem:[#allocation2 + $0x18] sm:$0xf] %v140
    %145 = vst [vmem:[#allocation2 + $0x24] sm:$0xf] %v141
    %v146 = vpack.c.bf16 %v100, %v100
    %v147 = vpack.c.bf16 %v101, %v101
    %v148 = vpack.c.bf16 %v102, %v102
    %v149 = vpack.c.bf16 %v103, %v103
    %150 = vst [vmem:[#allocation2 + $0x4] sm:$0xf] %v146
    %151 = vst [vmem:[#allocation2 + $0x10] sm:$0xf] %v147
    %152 = vst [vmem:[#allocation2 + $0x1c] sm:$0xf] %v148
    %153 = vst [vmem:[#allocation2 + $0x28] sm:$0xf] %v149
    %v154 = vpack.c.bf16 %v134, %v134
    %v155 = vpack.c.bf16 %v135, %v135
    %v156 = vpack.c.bf16 %v136, %v136
    %v157 = vpack.c.bf16 %v137, %v137
    %158 = vst [vmem:[#allocation2 + $0x8] sm:$0xf] %v154
    %159 = vst [vmem:[#allocation2 + $0x14] sm:$0xf] %v155
    %160 = vst [vmem:[#allocation2 + $0x20] sm:$0xf] %v156
    %161 = vst [vmem:[#allocation2 + $0x2c] sm:$0xf] %v157
    %v162 = vld [vmem:[#allocation2] sm:$0xff]
    %v163 = vld [vmem:[#allocation2 + $0x8] sm:$0xf]
    %v164 = vld [vmem:[#allocation2 + $0xc] sm:$0xff]
    %v165 = vld [vmem:[#allocation2 + $0x14] sm:$0xf]
    %v166 = vld [vmem:[#allocation2 + $0x18] sm:$0xff]
    %v167 = vld [vmem:[#allocation2 + $0x20] sm:$0xf]
    %v168 = vld [vmem:[#allocation2 + $0x24] sm:$0xff]
    %v169 = vld [vmem:[#allocation2 + $0x2c] sm:$0xf]
    %v170 = vld [vmem:[#allocation6] sm:$0xf]
    %v171 = vld [vmem:[#allocation6 + $0x4] sm:$0xf]
    %v172 = vld [vmem:[#allocation6 + $0x8] sm:$0xf]
    %v173 = vld [vmem:[#allocation6 + $0xc] sm:$0xf]
    %v174 = vld [vmem:[#allocation6 + $0x10] sm:$0xf]
    %v175 = vld [vmem:[#allocation6 + $0x14] sm:$0xf]
    %v176 = vld [vmem:[#allocation6 + $0x18] sm:$0xf]
    %v177 = vld [vmem:[#allocation6 + $0x1c] sm:$0xf]
    %v178 = vld [vmem:[#allocation6 + $0x20] sm:$0xf]
    %v179 = vld [vmem:[#allocation6 + $0x24] sm:$0xf]
    %v180 = vld [vmem:[#allocation6 + $0x28] sm:$0xf]
    %v181 = vld [vmem:[#allocation6 + $0x2c] sm:$0xf]
    %v182 = vld [vmem:[#allocation6 + $0x30] sm:$0xf]
    %v183 = vld [vmem:[#allocation6 + $0x34] sm:$0xf]
    %v184 = vld [vmem:[#allocation6 + $0x38] sm:$0xf]
    %v185 = vld [vmem:[#allocation6 + $0x3c] sm:$0xf]
    %v186 = vld [vmem:[#allocation6 + $0x40] sm:$0xf]
    %v187 = vld [vmem:[#allocation6 + $0x44] sm:$0xf]
    %v188 = vld [vmem:[#allocation6 + $0x48] sm:$0xf]
    %v189 = vld [vmem:[#allocation6 + $0x4c] sm:$0xf]
    %v190 = vld [vmem:[#allocation6 + $0x50] sm:$0xf]
    %v191 = vld [vmem:[#allocation6 + $0x54] sm:$0xf]
    %v192 = vld [vmem:[#allocation6 + $0x58] sm:$0xf]
    %v193 = vld [vmem:[#allocation6 + $0x5c] sm:$0xf]
    %v194 = vld [vmem:[#allocation6 + $0x60] sm:$0xf]
    %v195 = vld [vmem:[#allocation6 + $0x64] sm:$0xf]
    %v196 = vld [vmem:[#allocation6 + $0x68] sm:$0xf]
    %v197 = vld [vmem:[#allocation6 + $0x6c] sm:$0xf]
    %v198 = vld [vmem:[#allocation6 + $0x70] sm:$0xf]
    %v199 = vld [vmem:[#allocation6 + $0x74] sm:$0xf]
    %v200 = vld [vmem:[#allocation6 + $0x78] sm:$0xf]
    %v201 = vld [vmem:[#allocation6 + $0x7c] sm:$0xf]
    %v202 = vld [vmem:[#allocation6 + $0x80] sm:$0xf]
    %v203 = vld [vmem:[#allocation6 + $0x84] sm:$0xf]
    %v204 = vld [vmem:[#allocation6 + $0x88] sm:$0xf]
    %v205 = vld [vmem:[#allocation6 + $0x8c] sm:$0xf]
    %v206 = vld [vmem:[#allocation6 + $0x90] sm:$0xf]
    %v207 = vld [vmem:[#allocation6 + $0x94] sm:$0xf]
    %v208 = vld [vmem:[#allocation6 + $0x98] sm:$0xf]
    %v209 = vld [vmem:[#allocation6 + $0x9c] sm:$0xf]
    %v210 = vld [vmem:[#allocation6 + $0xa0] sm:$0xf]
    %v211 = vld [vmem:[#allocation6 + $0xa4] sm:$0xf]
    %v212 = vld [vmem:[#allocation6 + $0xa8] sm:$0xf]
    %v213 = vld [vmem:[#allocation6 + $0xac] sm:$0xf]
    %v214 = vld [vmem:[#allocation6 + $0xb0] sm:$0xf]
    %v215 = vld [vmem:[#allocation6 + $0xb4] sm:$0xf]
    %v216 = vld [vmem:[#allocation6 + $0xb8] sm:$0xf]
    %v217 = vld [vmem:[#allocation6 + $0xbc] sm:$0xf]
    %v226 = vunpack.c.l.b16 %v162
    %v227 = vunpack.c.h.b16 %v162
    %v228 = vunpack.c.l.b16 %v163
    %v229 = vunpack.c.l.b16 %v164
    %v230 = vunpack.c.h.b16 %v164
    %v231 = vunpack.c.l.b16 %v165
    %v232 = vunpack.c.l.b16 %v166
    %v233 = vunpack.c.h.b16 %v166
    %v234 = vunpack.c.l.b16 %v167
    %v235 = vunpack.c.l.b16 %v168
    %v236 = vunpack.c.h.b16 %v168
    %v237 = vunpack.c.l.b16 %v169
    %v238 = vpack.c.b16 %v229, %v226
    %v239 = vpack.c.b16 %v230, %v227
    %v240 = vpack.c.b16 %v231, %v228
    %v241 = vpack.c.b16 %v235, %v232
    %v242 = vpack.c.b16 %v236, %v233
    %v243 = vpack.c.b16 %v237, %v234
    %v298 = vunpack.c.l.b16 %v170
    %v299 = vunpack.c.l.b16 %v171
    %v300 = vunpack.c.l.b16 %v172
    %v301 = vunpack.c.l.b16 %v173
    %v302 = vunpack.c.l.b16 %v174
    %v303 = vunpack.c.l.b16 %v175
    %v304 = vunpack.c.l.b16 %v176
    %v305 = vunpack.c.l.b16 %v177
    %v306 = vunpack.c.l.b16 %v178
    %v307 = vunpack.c.l.b16 %v179
    %v308 = vunpack.c.l.b16 %v180
    %v309 = vunpack.c.l.b16 %v181
    %v310 = vunpack.c.l.b16 %v182
    %v311 = vunpack.c.l.b16 %v183
    %v312 = vunpack.c.l.b16 %v184
    %v313 = vunpack.c.l.b16 %v185
    %v314 = vunpack.c.l.b16 %v186
    %v315 = vunpack.c.l.b16 %v187
    %v316 = vunpack.c.l.b16 %v188
    %v317 = vunpack.c.l.b16 %v189
    %v318 = vunpack.c.l.b16 %v190
    %v319 = vunpack.c.l.b16 %v191
    %v320 = vunpack.c.l.b16 %v192
    %v321 = vunpack.c.l.b16 %v193
    %v322 = vunpack.c.l.b16 %v194
    %v323 = vunpack.c.l.b16 %v195
    %v324 = vunpack.c.l.b16 %v196
    %v325 = vunpack.c.l.b16 %v197
    %v326 = vunpack.c.l.b16 %v198
    %v327 = vunpack.c.l.b16 %v199
    %v328 = vunpack.c.l.b16 %v200
    %v329 = vunpack.c.l.b16 %v201
    %v330 = vunpack.c.l.b16 %v202
    %v331 = vunpack.c.l.b16 %v203
    %v332 = vunpack.c.l.b16 %v204
    %v333 = vunpack.c.l.b16 %v205
    %v334 = vunpack.c.l.b16 %v206
    %v335 = vunpack.c.l.b16 %v207
    %v336 = vunpack.c.l.b16 %v208
    %v337 = vunpack.c.l.b16 %v209
    %v338 = vunpack.c.l.b16 %v210
    %v339 = vunpack.c.l.b16 %v211
    %v340 = vunpack.c.l.b16 %v212
    %v341 = vunpack.c.l.b16 %v213
    %v342 = vunpack.c.l.b16 %v214
    %v343 = vunpack.c.l.b16 %v215
    %v344 = vunpack.c.l.b16 %v216
    %v345 = vunpack.c.l.b16 %v217
    %v346 = vpack.c.b16 %v299, %v298
    %v347 = vpack.c.b16 %v301, %v300
    %v348 = vpack.c.b16 %v303, %v302
    %v349 = vpack.c.b16 %v305, %v304
    %v350 = vpack.c.b16 %v307, %v306
    %v351 = vpack.c.b16 %v309, %v308
    %v352 = vpack.c.b16 %v311, %v310
    %v353 = vpack.c.b16 %v313, %v312
    %v354 = vpack.c.b16 %v315, %v314
    %v355 = vpack.c.b16 %v317, %v316
    %v356 = vpack.c.b16 %v319, %v318
    %v357 = vpack.c.b16 %v321, %v320
    %v358 = vpack.c.b16 %v323, %v322
    %v359 = vpack.c.b16 %v325, %v324
    %v360 = vpack.c.b16 %v327, %v326
    %v361 = vpack.c.b16 %v329, %v328
    %v362 = vpack.c.b16 %v331, %v330
    %v363 = vpack.c.b16 %v333, %v332
    %v364 = vpack.c.b16 %v335, %v334
    %v365 = vpack.c.b16 %v337, %v336
    %v366 = vpack.c.b16 %v339, %v338
    %v367 = vpack.c.b16 %v341, %v340
    %v368 = vpack.c.b16 %v343, %v342
    %v369 = vpack.c.b16 %v345, %v344
    %394 = vmatpush.bf16.msra.mxu0 %v353
    %395 = vmatpush.bf16.msra.mxu0 %v352
    %396 = vmatpush.bf16.msra.mxu0 %v351
    %397 = vmatpush.bf16.msra.mxu0 %v350
    %398 = vmatpush.bf16.msra.mxu0 %v349
    %399 = vmatpush.bf16.msra.mxu0 %v348
    %400 = vmatpush.bf16.msra.mxu0 %v347
    %401 = vmatpush.bf16.msra.mxu0 %v346
    %402 = vmatmul.bf16.gmra.mxu0 %v238
    %v403 = vpop.f32.mrf.mxu0
    %v404 = vadd.f32 0.0, %v403
    %v405 = vpop.f32.mrf.mxu0
    %v406 = vadd.f32 0.0, %v405
    %407 = vmatmul.bf16.gmra.mxu0 %v241
    %v408 = vpop.f32.mrf.mxu0
    %v409 = vadd.f32 0.0, %v408
    %v410 = vpop.f32.mrf.mxu0
    %v411 = vadd.f32 0.0, %v410
    %412 = vdwg.mxu0
    %413 = vmatpush.bf16.msra.mxu0 %v361
    %414 = vmatpush.bf16.msra.mxu0 %v360
    %415 = vmatpush.bf16.msra.mxu0 %v359
    %416 = vmatpush.bf16.msra.mxu0 %v358
    %417 = vmatpush.bf16.msra.mxu0 %v357
    %418 = vmatpush.bf16.msra.mxu0 %v356
    %419 = vmatpush.bf16.msra.mxu0 %v355
    %420 = vmatpush.bf16.msra.mxu0 %v354
    %421 = vmatmul.bf16.gmra.mxu0 %v239
    %v422 = vpop.f32.mrf.mxu0
    %v423 = vadd.f32 %v404, %v422
    %v424 = vpop.f32.mrf.mxu0
    %v425 = vadd.f32 %v406, %v424
    %426 = vmatmul.bf16.gmra.mxu0 %v242
    %v427 = vpop.f32.mrf.mxu0
    %v428 = vadd.f32 %v409, %v427
    %v429 = vpop.f32.mrf.mxu0
    %v430 = vadd.f32 %v411, %v429
    %431 = vdwg.mxu0
    %432 = vmatpush.bf16.msra.mxu0 %v369
    %433 = vmatpush.bf16.msra.mxu0 %v368
    %434 = vmatpush.bf16.msra.mxu0 %v367
    %435 = vmatpush.bf16.msra.mxu0 %v366
    %436 = vmatpush.bf16.msra.mxu0 %v365
    %437 = vmatpush.bf16.msra.mxu0 %v364
    %438 = vmatpush.bf16.msra.mxu0 %v363
    %439 = vmatpush.bf16.msra.mxu0 %v362
    %440 = vmatmul.bf16.gmra.mxu0 %v240
    %v441 = vpop.f32.mrf.mxu0
    %v442 = vadd.f32 %v423, %v441
    %v443 = vpop.f32.mrf.mxu0
    %v444 = vadd.f32 %v425, %v443
    %445 = vmatmul.bf16.gmra.mxu0 %v243
    %v446 = vpop.f32.mrf.mxu0
    %v447 = vadd.f32 %v428, %v446
    %v448 = vpop.f32.mrf.mxu0
    %v449 = vadd.f32 %v430, %v448
    %450 = vdwg.mxu0
    %v451 = vadd.f32 %v442, %v444
    %v452 = vadd.f32 %v451, %v447
    %v453 = vadd.f32 %v452, %v449
    %v454 = vrot.slane %v453, 4
    %v455 = vadd.f32 %v453, %v454
    %v456 = vrot.slane %v455, 2
    %v457 = vadd.f32 %v455, %v456
    %v458 = vrot.slane %v457, 1
    %v459 = vadd.f32 %v457, %v458
    %v460 = vld [vmem:[#allocation9] sm:$0xff]
    %v461 = vld [vmem:[#allocation9 + $0x8] sm:$0xff]
    %v462 = vld [vmem:[#allocation9 + $0x10] sm:$0xff]
    %v463 = vld [vmem:[#allocation9 + $0x18] sm:$0xff]
    %v464 = vld [vmem:[#allocation9 + $0x20] sm:$0xff]
    %v465 = vld [vmem:[#allocation9 + $0x28] sm:$0xff]
    %v466 = vld [vmem:[#allocation9 + $0x30] sm:$0xff]
    %v467 = vld [vmem:[#allocation9 + $0x38] sm:$0xff]
    %v468 = vld [vmem:[#allocation9 + $0x40] sm:$0xff]
    %v469 = vld [vmem:[#allocation9 + $0x48] sm:$0xff]
    %v470 = vld [vmem:[#allocation9 + $0x50] sm:$0xff]
    %v471 = vld [vmem:[#allocation9 + $0x58] sm:$0xff]
    %v472 = vld [vmem:[#allocation9 + $0x60] sm:$0xff]
    %v473 = vld [vmem:[#allocation9 + $0x68] sm:$0xff]
    %v474 = vld [vmem:[#allocation9 + $0x70] sm:$0xff]
    %v475 = vld [vmem:[#allocation9 + $0x78] sm:$0xff]
    %476 = vmatpush.msra.mxu0 %v475
    %477 = vmatpush.msra.mxu0 %v474
    %478 = vmatpush.msra.mxu0 %v473
    %479 = vmatpush.msra.mxu0 %v472
    %480 = vmatpush.msra.mxu0 %v471
    %481 = vmatpush.msra.mxu0 %v470
    %482 = vmatpush.msra.mxu0 %v469
    %483 = vmatpush.msra.mxu0 %v468
    %484 = vmatpush.msra.mxu0 %v467
    %485 = vmatpush.msra.mxu0 %v466
    %486 = vmatpush.msra.mxu0 %v465
    %487 = vmatpush.msra.mxu0 %v464
    %488 = vmatpush.msra.mxu0 %v463
    %489 = vmatpush.msra.mxu0 %v462
    %490 = vmatpush.msra.mxu0 %v461
    %491 = vmatpush.msra.mxu0 %v460
    %492 = vmatmul.f32.gmra.mxu0 %v459
    %v493 = vpop.f32.mrf.mxu0
    %v494 = vadd.f32 0.0, %v493
    %495 = vdwg.mxu0
    %v496 = vperm.slane %v494, 0
    %v497 = vsub.f32 %v442, %v496
    %v498 = vsub.f32 %v444, %v496
    %v499 = vsub.f32 %v447, %v496
    %v500 = vsub.f32 %v449, %v496
    %v501 = vmul.f32 %v497, %v497
    %v502 = vmul.f32 %v498, %v498
    %v503 = vmul.f32 %v499, %v499
    %v504 = vmul.f32 %v500, %v500
    %v505 = vadd.f32 %v501, %v502
    %v506 = vadd.f32 %v505, %v503
    %v507 = vadd.f32 %v506, %v504
    %v508 = vrot.slane %v507, 4
    %v509 = vadd.f32 %v507, %v508
    %v510 = vrot.slane %v509, 2
    %v511 = vadd.f32 %v509, %v510
    %v512 = vrot.slane %v511, 1
    %v513 = vadd.f32 %v511, %v512
    %514 = vmatpush.msra.mxu0 %v475
    %515 = vmatpush.msra.mxu0 %v474
    %516 = vmatpush.msra.mxu0 %v473
    %517 = vmatpush.msra.mxu0 %v472
    %518 = vmatpush.msra.mxu0 %v471
    %519 = vmatpush.msra.mxu0 %v470
    %520 = vmatpush.msra.mxu0 %v469
    %521 = vmatpush.msra.mxu0 %v468
    %522 = vmatpush.msra.mxu0 %v467
    %523 = vmatpush.msra.mxu0 %v466
    %524 = vmatpush.msra.mxu0 %v465
    %525 = vmatpush.msra.mxu0 %v464
    %526 = vmatpush.msra.mxu0 %v463
    %527 = vmatpush.msra.mxu0 %v462
    %528 = vmatpush.msra.mxu0 %v461
    %529 = vmatpush.msra.mxu0 %v460
    %530 = vmatmul.f32.gmra.mxu0 %v513
    %v531 = vpop.f32.mrf.mxu0
    %v532 = vadd.f32 1e-05, %v531
    %533 = vdwg.mxu0
    %v534 = vrsqrt.pop %v532
    %v535 = vmul.f32 %v534, %v532
    %v536 = vmul.f32 %v535, %v534
    %v537 = vmul.f32 0.5, %v536
    %v538 = vsub.f32 1.5, %v537
    %v539 = vmul.f32 %v534, %v538
    %vm540 = vweird.f32 %v532
    %vm541 = vweird.f32 %v534
    %vm542 = vmor %vm540, %vm541
    %v543 = vsel %vm542, %v534, %v539
    %v544 = vperm.slane %v543, 0
    %v545 = vmul.f32 %v497, %v544
    %v546 = vmul.f32 %v498, %v544
    %v547 = vmul.f32 %v499, %v544
    %v548 = vmul.f32 %v500, %v544
    %v549 = vld [vmem:[%s2] sm:$0x1]
    %v551 = vperm.slane %v549, 0
    %v553 = vmul.f32 %v545, %v551
    %v554 = vmul.f32 %v546, %v551
    %v555 = vmul.f32 %v547, %v551
    %v556 = vmul.f32 %v548, %v551
    %v557 = vld [vmem:[%s3] sm:$0x1]
    %v559 = vperm.slane %v557, 0
    %v561 = vadd.f32 %v553, %v559
    %v562 = vadd.f32 %v554, %v559
    %v563 = vadd.f32 %v555, %v559
    %v564 = vadd.f32 %v556, %v559
    %v565 = vmax.f32 %v561, 0.0
    %v566 = vmax.f32 %v562, 0.0
    %v567 = vmax.f32 %v563, 0.0
    %v568 = vmax.f32 %v564, 0.0
    %v569 = vrot.slane %v565, 7
    %v570 = vrot.slane %v566, 7
    %v571 = vrot.slane %v567, 7
    %v572 = vrot.slane %v568, 7
    %v573 = vsel %vm108, %v571, %v572
    %v574 = vsel %vm108, %v570, %v571
    %v575 = vsel %vm108, %v569, %v570
    %v576 = vsel %vm108, %v572, %v569
    %v577 = vsel %vm115, %v576, 0.0
    %v578 = vsel %vm116, %v575, 0.0
    %v579 = vsel %vm115, %v574, 0.0
    %v580 = vsel %vm116, %v573, 0.0
    %v581 = vrot.slane %v565, 1
    %v582 = vrot.slane %v566, 1
    %v583 = vrot.slane %v567, 1
    %v584 = vrot.slane %v568, 1
    %v585 = vsel %vm125, %v583, %v584
    %v586 = vsel %vm125, %v582, %v583
    %v587 = vsel %vm125, %v581, %v582
    %v588 = vsel %vm125, %v584, %v581
    %v589 = vsel %vm132, %v587, 0.0
    %v590 = vsel %vm133, %v586, 0.0
    %v591 = vsel %vm132, %v585, 0.0
    %v592 = vsel %vm133, %v588, 0.0
    %v593 = vpack.c.bf16 %v577, %v577
    %v594 = vpack.c.bf16 %v578, %v578
    %v595 = vpack.c.bf16 %v579, %v579
    %v596 = vpack.c.bf16 %v580, %v580
    %597 = vst [vmem:[#allocation2] sm:$0xf] %v593
    %598 = vst [vmem:[#allocation2 + $0xc] sm:$0xf] %v594
    %599 = vst [vmem:[#allocation2 + $0x18] sm:$0xf] %v595
    %600 = vst [vmem:[#allocation2 + $0x24] sm:$0xf] %v596
    %v601 = vpack.c.bf16 %v565, %v565
    %v602 = vpack.c.bf16 %v566, %v566
    %v603 = vpack.c.bf16 %v567, %v567
    %v604 = vpack.c.bf16 %v568, %v568
    %605 = vst [vmem:[#allocation2 + $0x4] sm:$0xf] %v601
    %606 = vst [vmem:[#allocation2 + $0x10] sm:$0xf] %v602
    %607 = vst [vmem:[#allocation2 + $0x1c] sm:$0xf] %v603
    %608 = vst [vmem:[#allocation2 + $0x28] sm:$0xf] %v604
    %v609 = vpack.c.bf16 %v589, %v589
    %v610 = vpack.c.bf16 %v590, %v590
    %v611 = vpack.c.bf16 %v591, %v591
    %v612 = vpack.c.bf16 %v592, %v592
    %613 = vst [vmem:[#allocation2 + $0x8] sm:$0xf] %v609
    %614 = vst [vmem:[#allocation2 + $0x14] sm:$0xf] %v610
    %615 = vst [vmem:[#allocation2 + $0x20] sm:$0xf] %v611
    %616 = vst [vmem:[#allocation2 + $0x2c] sm:$0xf] %v612
    %v617 = vld [vmem:[#allocation2] sm:$0xff]
    %v618 = vld [vmem:[#allocation2 + $0x8] sm:$0xf]
    %v619 = vld [vmem:[#allocation2 + $0xc] sm:$0xff]
    %v620 = vld [vmem:[#allocation2 + $0x14] sm:$0xf]
    %v621 = vld [vmem:[#allocation2 + $0x18] sm:$0xff]
    %v622 = vld [vmem:[#allocation2 + $0x20] sm:$0xf]
    %v623 = vld [vmem:[#allocation2 + $0x24] sm:$0xff]
    %v624 = vld [vmem:[#allocation2 + $0x2c] sm:$0xf]
    %v625 = vld [vmem:[#allocation8] sm:$0xf]
    %v626 = vld [vmem:[#allocation8 + $0x4] sm:$0xf]
    %v627 = vld [vmem:[#allocation8 + $0x8] sm:$0xf]
    %v628 = vld [vmem:[#allocation8 + $0xc] sm:$0xf]
    %v629 = vld [vmem:[#allocation8 + $0x10] sm:$0xf]
    %v630 = vld [vmem:[#allocation8 + $0x14] sm:$0xf]
    %v631 = vld [vmem:[#allocation8 + $0x18] sm:$0xf]
    %v632 = vld [vmem:[#allocation8 + $0x1c] sm:$0xf]
    %v633 = vld [vmem:[#allocation8 + $0x20] sm:$0xf]
    %v634 = vld [vmem:[#allocation8 + $0x24] sm:$0xf]
    %v635 = vld [vmem:[#allocation8 + $0x28] sm:$0xf]
    %v636 = vld [vmem:[#allocation8 + $0x2c] sm:$0xf]
    %v637 = vld [vmem:[#allocation8 + $0x30] sm:$0xf]
    %v638 = vld [vmem:[#allocation8 + $0x34] sm:$0xf]
    %v639 = vld [vmem:[#allocation8 + $0x38] sm:$0xf]
    %v640 = vld [vmem:[#allocation8 + $0x3c] sm:$0xf]
    %v641 = vld [vmem:[#allocation8 + $0x40] sm:$0xf]
    %v642 = vld [vmem:[#allocation8 + $0x44] sm:$0xf]
    %v643 = vld [vmem:[#allocation8 + $0x48] sm:$0xf]
    %v644 = vld [vmem:[#allocation8 + $0x4c] sm:$0xf]
    %v645 = vld [vmem:[#allocation8 + $0x50] sm:$0xf]
    %v646 = vld [vmem:[#allocation8 + $0x54] sm:$0xf]
    %v647 = vld [vmem:[#allocation8 + $0x58] sm:$0xf]
    %v648 = vld [vmem:[#allocation8 + $0x5c] sm:$0xf]
    %v649 = vld [vmem:[#allocation8 + $0x60] sm:$0xf]
    %v650 = vld [vmem:[#allocation8 + $0x64] sm:$0xf]
    %v651 = vld [vmem:[#allocation8 + $0x68] sm:$0xf]
    %v652 = vld [vmem:[#allocation8 + $0x6c] sm:$0xf]
    %v653 = vld [vmem:[#allocation8 + $0x70] sm:$0xf]
    %v654 = vld [vmem:[#allocation8 + $0x74] sm:$0xf]
    %v655 = vld [vmem:[#allocation8 + $0x78] sm:$0xf]
    %v656 = vld [vmem:[#allocation8 + $0x7c] sm:$0xf]
    %v657 = vld [vmem:[#allocation8 + $0x80] sm:$0xf]
    %v658 = vld [vmem:[#allocation8 + $0x84] sm:$0xf]
    %v659 = vld [vmem:[#allocation8 + $0x88] sm:$0xf]
    %v660 = vld [vmem:[#allocation8 + $0x8c] sm:$0xf]
    %v661 = vld [vmem:[#allocation8 + $0x90] sm:$0xf]
    %v662 = vld [vmem:[#allocation8 + $0x94] sm:$0xf]
    %v663 = vld [vmem:[#allocation8 + $0x98] sm:$0xf]
    %v664 = vld [vmem:[#allocation8 + $0x9c] sm:$0xf]
    %v665 = vld [vmem:[#allocation8 + $0xa0] sm:$0xf]
    %v666 = vld [vmem:[#allocation8 + $0xa4] sm:$0xf]
    %v667 = vld [vmem:[#allocation8 + $0xa8] sm:$0xf]
    %v668 = vld [vmem:[#allocation8 + $0xac] sm:$0xf]
    %v669 = vld [vmem:[#allocation8 + $0xb0] sm:$0xf]
    %v670 = vld [vmem:[#allocation8 + $0xb4] sm:$0xf]
    %v671 = vld [vmem:[#allocation8 + $0xb8] sm:$0xf]
    %v672 = vld [vmem:[#allocation8 + $0xbc] sm:$0xf]
    %v681 = vunpack.c.l.b16 %v617
    %v682 = vunpack.c.h.b16 %v617
    %v683 = vunpack.c.l.b16 %v618
    %v684 = vunpack.c.l.b16 %v619
    %v685 = vunpack.c.h.b16 %v619
    %v686 = vunpack.c.l.b16 %v620
    %v687 = vunpack.c.l.b16 %v621
    %v688 = vunpack.c.h.b16 %v621
    %v689 = vunpack.c.l.b16 %v622
    %v690 = vunpack.c.l.b16 %v623
    %v691 = vunpack.c.h.b16 %v623
    %v692 = vunpack.c.l.b16 %v624
    %v693 = vpack.c.b16 %v684, %v681
    %v694 = vpack.c.b16 %v685, %v682
    %v695 = vpack.c.b16 %v686, %v683
    %v696 = vpack.c.b16 %v690, %v687
    %v697 = vpack.c.b16 %v691, %v688
    %v698 = vpack.c.b16 %v692, %v689
    %v753 = vunpack.c.l.b16 %v625
    %v754 = vunpack.c.l.b16 %v626
    %v755 = vunpack.c.l.b16 %v627
    %v756 = vunpack.c.l.b16 %v628
    %v757 = vunpack.c.l.b16 %v629
    %v758 = vunpack.c.l.b16 %v630
    %v759 = vunpack.c.l.b16 %v631
    %v760 = vunpack.c.l.b16 %v632
    %v761 = vunpack.c.l.b16 %v633
    %v762 = vunpack.c.l.b16 %v634
    %v763 = vunpack.c.l.b16 %v635
    %v764 = vunpack.c.l.b16 %v636
    %v765 = vunpack.c.l.b16 %v637
    %v766 = vunpack.c.l.b16 %v638
    %v767 = vunpack.c.l.b16 %v639
    %v768 = vunpack.c.l.b16 %v640
    %v769 = vunpack.c.l.b16 %v641
    %v770 = vunpack.c.l.b16 %v642
    %v771 = vunpack.c.l.b16 %v643
    %v772 = vunpack.c.l.b16 %v644
    %v773 = vunpack.c.l.b16 %v645
    %v774 = vunpack.c.l.b16 %v646
    %v775 = vunpack.c.l.b16 %v647
    %v776 = vunpack.c.l.b16 %v648
    %v777 = vunpack.c.l.b16 %v649
    %v778 = vunpack.c.l.b16 %v650
    %v779 = vunpack.c.l.b16 %v651
    %v780 = vunpack.c.l.b16 %v652
    %v781 = vunpack.c.l.b16 %v653
    %v782 = vunpack.c.l.b16 %v654
    %v783 = vunpack.c.l.b16 %v655
    %v784 = vunpack.c.l.b16 %v656
    %v785 = vunpack.c.l.b16 %v657
    %v786 = vunpack.c.l.b16 %v658
    %v787 = vunpack.c.l.b16 %v659
    %v788 = vunpack.c.l.b16 %v660
    %v789 = vunpack.c.l.b16 %v661
    %v790 = vunpack.c.l.b16 %v662
    %v791 = vunpack.c.l.b16 %v663
    %v792 = vunpack.c.l.b16 %v664
    %v793 = vunpack.c.l.b16 %v665
    %v794 = vunpack.c.l.b16 %v666
    %v795 = vunpack.c.l.b16 %v667
    %v796 = vunpack.c.l.b16 %v668
    %v797 = vunpack.c.l.b16 %v669
    %v798 = vunpack.c.l.b16 %v670
    %v799 = vunpack.c.l.b16 %v671
    %v800 = vunpack.c.l.b16 %v672
    %v801 = vpack.c.b16 %v754, %v753
    %v802 = vpack.c.b16 %v756, %v755
    %v803 = vpack.c.b16 %v758, %v757
    %v804 = vpack.c.b16 %v760, %v759
    %v805 = vpack.c.b16 %v762, %v761
    %v806 = vpack.c.b16 %v764, %v763
    %v807 = vpack.c.b16 %v766, %v765
    %v808 = vpack.c.b16 %v768, %v767
    %v809 = vpack.c.b16 %v770, %v769
    %v810 = vpack.c.b16 %v772, %v771
    %v811 = vpack.c.b16 %v774, %v773
    %v812 = vpack.c.b16 %v776, %v775
    %v813 = vpack.c.b16 %v778, %v777
    %v814 = vpack.c.b16 %v780, %v779
    %v815 = vpack.c.b16 %v782, %v781
    %v816 = vpack.c.b16 %v784, %v783
    %v817 = vpack.c.b16 %v786, %v785
    %v818 = vpack.c.b16 %v788, %v787
    %v819 = vpack.c.b16 %v790, %v789
    %v820 = vpack.c.b16 %v792, %v791
    %v821 = vpack.c.b16 %v794, %v793
    %v822 = vpack.c.b16 %v796, %v795
    %v823 = vpack.c.b16 %v798, %v797
    %v824 = vpack.c.b16 %v800, %v799
    %849 = vmatpush.bf16.msra.mxu0 %v808
    %850 = vmatpush.bf16.msra.mxu0 %v807
    %851 = vmatpush.bf16.msra.mxu0 %v806
    %852 = vmatpush.bf16.msra.mxu0 %v805
    %853 = vmatpush.bf16.msra.mxu0 %v804
    %854 = vmatpush.bf16.msra.mxu0 %v803
    %855 = vmatpush.bf16.msra.mxu0 %v802
    %856 = vmatpush.bf16.msra.mxu0 %v801
    %857 = vmatmul.bf16.gmra.mxu0 %v693
    %v858 = vpop.f32.mrf.mxu0
    %v859 = vadd.f32 0.0, %v858
    %v860 = vpop.f32.mrf.mxu0
    %v861 = vadd.f32 0.0, %v860
    %862 = vmatmul.bf16.gmra.mxu0 %v696
    %v863 = vpop.f32.mrf.mxu0
    %v864 = vadd.f32 0.0, %v863
    %v865 = vpop.f32.mrf.mxu0
    %v866 = vadd.f32 0.0, %v865
    %867 = vdwg.mxu0
    %868 = vmatpush.bf16.msra.mxu0 %v816
    %869 = vmatpush.bf16.msra.mxu0 %v815
    %870 = vmatpush.bf16.msra.mxu0 %v814
    %871 = vmatpush.bf16.msra.mxu0 %v813
    %872 = vmatpush.bf16.msra.mxu0 %v812
    %873 = vmatpush.bf16.msra.mxu0 %v811
    %874 = vmatpush.bf16.msra.mxu0 %v810
    %875 = vmatpush.bf16.msra.mxu0 %v809
    %876 = vmatmul.bf16.gmra.mxu0 %v694
    %v877 = vpop.f32.mrf.mxu0
    %v878 = vadd.f32 %v859, %v877
    %v879 = vpop.f32.mrf.mxu0
    %v880 = vadd.f32 %v861, %v879
    %881 = vmatmul.bf16.gmra.mxu0 %v697
    %v882 = vpop.f32.mrf.mxu0
    %v883 = vadd.f32 %v864, %v882
    %v884 = vpop.f32.mrf.mxu0
    %v885 = vadd.f32 %v866, %v884
    %886 = vdwg.mxu0
    %887 = vmatpush.bf16.msra.mxu0 %v824
    %888 = vmatpush.bf16.msra.mxu0 %v823
    %889 = vmatpush.bf16.msra.mxu0 %v822
    %890 = vmatpush.bf16.msra.mxu0 %v821
    %891 = vmatpush.bf16.msra.mxu0 %v820
    %892 = vmatpush.bf16.msra.mxu0 %v819
    %893 = vmatpush.bf16.msra.mxu0 %v818
    %894 = vmatpush.bf16.msra.mxu0 %v817
    %895 = vmatmul.bf16.gmra.mxu0 %v695
    %v896 = vpop.f32.mrf.mxu0
    %v897 = vadd.f32 %v878, %v896
    %v898 = vpop.f32.mrf.mxu0
    %v899 = vadd.f32 %v880, %v898
    %900 = vmatmul.bf16.gmra.mxu0 %v698
    %v901 = vpop.f32.mrf.mxu0
    %v902 = vadd.f32 %v883, %v901
    %v903 = vpop.f32.mrf.mxu0
    %v904 = vadd.f32 %v885, %v903
    %905 = vdwg.mxu0
    %v906 = vadd.f32 %v897, %v899
    %v907 = vadd.f32 %v906, %v902
    %v908 = vadd.f32 %v907, %v904
    %v909 = vrot.slane %v908, 4
    %v910 = vadd.f32 %v908, %v909
    %v911 = vrot.slane %v910, 2
    %v912 = vadd.f32 %v910, %v911
    %v913 = vrot.slane %v912, 1
    %v914 = vadd.f32 %v912, %v913
    %v915 = vld [vmem:[#allocation9] sm:$0xff]
    %v916 = vld [vmem:[#allocation9 + $0x8] sm:$0xff]
    %v917 = vld [vmem:[#allocation9 + $0x10] sm:$0xff]
    %v918 = vld [vmem:[#allocation9 + $0x18] sm:$0xff]
    %v919 = vld [vmem:[#allocation9 + $0x20] sm:$0xff]
    %v920 = vld [vmem:[#allocation9 + $0x28] sm:$0xff]
    %v921 = vld [vmem:[#allocation9 + $0x30] sm:$0xff]
    %v922 = vld [vmem:[#allocation9 + $0x38] sm:$0xff]
    %v923 = vld [vmem:[#allocation9 + $0x40] sm:$0xff]
    %v924 = vld [vmem:[#allocation9 + $0x48] sm:$0xff]
    %v925 = vld [vmem:[#allocation9 + $0x50] sm:$0xff]
    %v926 = vld [vmem:[#allocation9 + $0x58] sm:$0xff]
    %v927 = vld [vmem:[#allocation9 + $0x60] sm:$0xff]
    %v928 = vld [vmem:[#allocation9 + $0x68] sm:$0xff]
    %v929 = vld [vmem:[#allocation9 + $0x70] sm:$0xff]
    %v930 = vld [vmem:[#allocation9 + $0x78] sm:$0xff]
    %931 = vmatpush.msra.mxu0 %v930
    %932 = vmatpush.msra.mxu0 %v929
    %933 = vmatpush.msra.mxu0 %v928
    %934 = vmatpush.msra.mxu0 %v927
    %935 = vmatpush.msra.mxu0 %v926
    %936 = vmatpush.msra.mxu0 %v925
    %937 = vmatpush.msra.mxu0 %v924
    %938 = vmatpush.msra.mxu0 %v923
    %939 = vmatpush.msra.mxu0 %v922
    %940 = vmatpush.msra.mxu0 %v921
    %941 = vmatpush.msra.mxu0 %v920
    %942 = vmatpush.msra.mxu0 %v919
    %943 = vmatpush.msra.mxu0 %v918
    %944 = vmatpush.msra.mxu0 %v917
    %945 = vmatpush.msra.mxu0 %v916
    %946 = vmatpush.msra.mxu0 %v915
    %947 = vmatmul.f32.gmra.mxu0 %v914
    %v948 = vpop.f32.mrf.mxu0
    %v949 = vadd.f32 0.0, %v948
    %950 = vdwg.mxu0
    %v951 = vperm.slane %v949, 0
    %v952 = vsub.f32 %v897, %v951
    %v953 = vsub.f32 %v899, %v951
    %v954 = vsub.f32 %v902, %v951
    %v955 = vsub.f32 %v904, %v951
    %v956 = vmul.f32 %v952, %v952
    %v957 = vmul.f32 %v953, %v953
    %v958 = vmul.f32 %v954, %v954
    %v959 = vmul.f32 %v955, %v955
    %v960 = vadd.f32 %v956, %v957
    %v961 = vadd.f32 %v960, %v958
    %v962 = vadd.f32 %v961, %v959
    %v963 = vrot.slane %v962, 4
    %v964 = vadd.f32 %v962, %v963
    %v965 = vrot.slane %v964, 2
    %v966 = vadd.f32 %v964, %v965
    %v967 = vrot.slane %v966, 1
    %v968 = vadd.f32 %v966, %v967
    %969 = vmatpush.msra.mxu0 %v930
    %970 = vmatpush.msra.mxu0 %v929
    %971 = vmatpush.msra.mxu0 %v928
    %972 = vmatpush.msra.mxu0 %v927
    %973 = vmatpush.msra.mxu0 %v926
    %974 = vmatpush.msra.mxu0 %v925
    %975 = vmatpush.msra.mxu0 %v924
    %976 = vmatpush.msra.mxu0 %v923
    %977 = vmatpush.msra.mxu0 %v922
    %978 = vmatpush.msra.mxu0 %v921
    %979 = vmatpush.msra.mxu0 %v920
    %980 = vmatpush.msra.mxu0 %v919
    %981 = vmatpush.msra.mxu0 %v918
    %982 = vmatpush.msra.mxu0 %v917
    %983 = vmatpush.msra.mxu0 %v916
    %984 = vmatpush.msra.mxu0 %v915
    %985 = vmatmul.f32.gmra.mxu0 %v968
    %v986 = vpop.f32.mrf.mxu0
    %v987 = vadd.f32 1e-05, %v986
    %988 = vdwg.mxu0
    %v989 = vrsqrt.pop %v987
    %v990 = vmul.f32 %v989, %v987
    %v991 = vmul.f32 %v990, %v989
    %v992 = vmul.f32 0.5, %v991
    %v993 = vsub.f32 1.5, %v992
    %v994 = vmul.f32 %v989, %v993
    %vm995 = vweird.f32 %v987
    %vm996 = vweird.f32 %v989
    %vm997 = vmor %vm995, %vm996
    %v998 = vsel %vm997, %v989, %v994
    %v999 = vperm.slane %v998, 0
    %v1000 = vmul.f32 %v952, %v999
    %v1001 = vmul.f32 %v953, %v999
    %v1002 = vmul.f32 %v954, %v999
    %v1003 = vmul.f32 %v955, %v999
    %v1004 = vld [vmem:[%s5] sm:$0x1]
    %v1006 = vperm.slane %v1004, 0
    %v1008 = vmul.f32 %v1000, %v1006
    %v1009 = vmul.f32 %v1001, %v1006
    %v1010 = vmul.f32 %v1002, %v1006
    %v1011 = vmul.f32 %v1003, %v1006
    %v1012 = vld [vmem:[%s6] sm:$0x1]
    %v1014 = vperm.slane %v1012, 0
    %v1016 = vadd.f32 %v1008, %v1014
    %v1017 = vadd.f32 %v1009, %v1014
    %v1018 = vadd.f32 %v1010, %v1014
    %v1019 = vadd.f32 %v1011, %v1014
    %v1020 = vld [vmem:[#allocation3] sm:$0xff]
    %v1021 = vld [vmem:[#allocation3 + $0x8] sm:$0xff]
    %v1022 = vld [vmem:[#allocation3 + $0x10] sm:$0xff]
    %v1023 = vld [vmem:[#allocation3 + $0x18] sm:$0xff]
    %v1024 = vadd.f32 %v1016, %v1020
    %v1025 = vadd.f32 %v1017, %v1021
    %v1026 = vadd.f32 %v1018, %v1022
    %v1027 = vadd.f32 %v1019, %v1023
    %v1028 = vmax.f32 %v1024, 0.0
    %v1029 = vmax.f32 %v1025, 0.0
    %v1030 = vmax.f32 %v1026, 0.0
    %v1031 = vmax.f32 %v1027, 0.0
    %1032 = vst [vmem:[#allocation11] sm:$0xff] %v1028
    %1033 = vst [vmem:[#allocation11 + $0x8] sm:$0xff] %v1029
    %1034 = vst [vmem:[#allocation11 + $0x10] sm:$0xff] %v1030
    %1035 = vst [vmem:[#allocation11 + $0x18] sm:$0xff] %v1031
    // Predicated region
    $region50: #{tpu_custom_call.1} parent=1 // pred_check
      _
    $region51: #{tpu_custom_call.1} parent=1 // pred_check_branch
      %1037 = sbr.rel (0) target = $region53
    $region52: #{tpu_custom_call.1} parent=1 // pred_region
      %1039 = vsyncadd [#allocation5], 0
      %s1040 = sshll.u32 [#allocation11], 4
      %s1041 = int_to_ptr.vmem [resolvable:$true] %s1040
      %s1042 = sshll.u32 %s8, 4
      %s1043 = int_to_ptr.hbm [resolvable:$true] %s1042
      %1048 = dma.vmem_to_hbm [thread:$0]  %s1041, 512, %s1043, [#allocation5], 128, 128, 8
    $region53: #{tpu_custom_call.1} parent=1 // pred_fallthru
      _
    // Predicated region
    $region54: #{tpu_custom_call.1} parent=1 // pred_check
      _
    $region55: #{tpu_custom_call.1} parent=1 // pred_check_branch
      %1050 = sbr.rel (0) target = $region57
    $region56: #{tpu_custom_call.1} parent=1 // pred_region
      %1052 = dma.done [#allocation5], 512
    $region57: #{tpu_custom_call.1} parent=1 // pred_fallthru
      _
    %1053 = vsyncpa [#allocation4], 1
    %1054 = vsyncpa [#allocation7], 1
    %1055 = vsyncpa [#allocation10], 1
    %1056 = vsyncpa [#allocation5], 1

</llo_original>
